<compile_context>
chip_gen: v6e
topology: v6e:2x2x1
jax: 0.10.0
libtpu: 0.0.40
codegen_flags: <defaults>
</compile_context>

<pallas_src>
import jax
import jax.numpy as jnp
import numpy as np
from jax.experimental import pallas as pl
from jax.experimental.pallas import tpu as pltpu

B, N, DIM_IN, DIM_OUT, CHEB_K, EMBED_DIM = 2, 16, 4, 32, 3, 8
HIDDEN = DIM_OUT // 4      # AttLayer reduction = 4
BO = B * DIM_OUT           # lane-folded channel width (batch folded along lanes)


def avwgcn_kernel(xbc_ref, xf_ref, sf_ref, cheb_ref, wbig_ref, bias_ref,
                  wi_ref, bi_ref, wg_ref, bg_ref, w1_ref, w2_ref, out_ref):
    f32 = jnp.float32

    # ---- branch 0: node-adaptive graph conv over the learned-Laplacian supports ----
    # One MXU push gives, for every (k, i, batch), the graph-convolved column
    # already broadcast across the DIM_OUT lanes (x was pre-broadcast in the wrapper).
    xg = jnp.dot(sf_ref[...], xbc_ref[...], preferred_element_type=f32)    # (K*N, I*B*O)
    prod = xg * wbig_ref[...]                                              # (K*N, I*B*O)
    # reduce over i (aligned lane chunks of width B*O), then over k (row chunks)
    tmp = prod[:, 0:BO]
    for i in range(1, DIM_IN):
        tmp = tmp + prod[:, i * BO:(i + 1) * BO]                           # (K*N, B*O)
    acc0 = tmp[0:N, :]
    for k in range(1, CHEB_K):
        acc0 = acc0 + tmp[k * N:(k + 1) * N, :]
    x_gconv0 = acc0 + bias_ref[...]                                        # (N, B*O)

    # ---- branch 1: fixed-Chebyshev graph conv, batch folded along lanes ----
    x2 = jnp.dot(xf_ref[...], wi_ref[...], preferred_element_type=f32) + bi_ref[...]   # (N, B*O)
    yg = jnp.dot(cheb_ref[...], x2, preferred_element_type=f32)                        # (K*N, B*O)
    acc1 = jnp.dot(yg[0:N, :], wg_ref[0], preferred_element_type=f32)
    for k in range(1, CHEB_K):
        acc1 = acc1 + jnp.dot(yg[k * N:(k + 1) * N, :], wg_ref[k],
                              preferred_element_type=f32)
    x_gconv1 = acc1 + bg_ref[...]                                          # (N, B*O)

    # ---- leaky relu + fused SE gates (both branches & both batches in 2 matmuls) ----
    h0 = jnp.where(x_gconv0 > 0, x_gconv0, 0.01 * x_gconv0)
    h1 = jnp.where(x_gconv1 > 0, x_gconv1, 0.01 * x_gconv1)
    pooled = jnp.concatenate([jnp.mean(h0, axis=0, keepdims=True),
                              jnp.mean(h1, axis=0, keepdims=True)], axis=1)  # (1, 2*B*O)
    z = jnp.maximum(jnp.dot(pooled, w1_ref[...], preferred_element_type=f32), 0.0)
    gates = jax.nn.sigmoid(jnp.dot(z, w2_ref[...], preferred_element_type=f32))  # (1, 2*B*O)

    out = h0 * gates[:, 0:BO] + h1 * gates[:, BO:2 * BO]                   # (N, B*O)
    out_ref[...] = out.astype(out_ref.dtype)


def _block_diag(a, b):
    za = jnp.zeros((a.shape[0], b.shape[1]), a.dtype)
    zb = jnp.zeros((b.shape[0], a.shape[1]), b.dtype)
    return jnp.block([[a, za], [zb, b]])


@jax.jit
def avwgcn_forward(x, node_emb, L_learned, cheb_polys, params):
    f32 = jnp.float32

    # ---- batch-invariant prep, hoisted out of the kernel (plain XLA ops) ----
    sup = [jnp.eye(N, dtype=f32), L_learned]
    for _ in range(2, CHEB_K):
        sup.append(2.0 * L_learned @ sup[-1] - sup[-2])
    supports_flat = jnp.concatenate(sup, axis=0)                       # (K*N, N)
    cheb_flat = cheb_polys.reshape(CHEB_K * N, N)                      # (K*N, N)

    # node-adaptive weights laid out so the in-kernel accumulation is a full-lane
    # elementwise multiply: column index = (i*B + b)*O + o, tiled over the batch.
    weights = jnp.einsum('nd,dkio->nkio', node_emb, params['weights_pool'])   # (N,K,I,O)
    w_big = jnp.broadcast_to(
        weights.transpose(1, 0, 2, 3)[:, :, :, None, :],               # (K,N,I,1,O)
        (CHEB_K, N, DIM_IN, B, DIM_OUT)).reshape(CHEB_K * N, DIM_IN * BO)
    bias_fold = jnp.tile(node_emb @ params['bias_pool'], (1, B))       # (N, B*O)

    # x presented twice: lane-broadcast form for branch 0, lane-folded for branch 1.
    xbc = jnp.broadcast_to(
        x.transpose(1, 2, 0)[:, :, :, None],                           # (N,I,B,1)
        (N, DIM_IN, B, DIM_OUT)).reshape(N, DIM_IN * BO)               # (N, I*B*O)
    x_fold = x.transpose(1, 0, 2).reshape(N, B * DIM_IN)               # (N, B*I)

    # batch-folded (block-diagonal) dense weights + batch-tiled biases.
    eye_b = jnp.eye(B, dtype=f32)
    wi_bd = jnp.kron(eye_b, params['w_init'])                          # (B*I, B*O)
    bi_fold = jnp.tile(params['b_init'], (1, B))                       # (1, B*O)
    wg_bd = jnp.stack(
        [jnp.kron(eye_b, params['w_g'][k * DIM_OUT:(k + 1) * DIM_OUT, :])
         for k in range(CHEB_K)], axis=0)                              # (K, B*O, B*O)
    bg_fold = jnp.tile(params['b_g'], (1, B))                          # (1, B*O)

    # both SE gates (and both batches) fused into two matmuls.
    w1_big = _block_diag(jnp.kron(eye_b, params['g1_w1']),
                         jnp.kron(eye_b, params['g2_w1']))             # (2*B*O, 2*B*H)
    w2_big = _block_diag(jnp.kron(eye_b, params['g1_w2']),
                         jnp.kron(eye_b, params['g2_w2']))             # (2*B*H, 2*B*O)

    vmem_spec = pl.BlockSpec(memory_space=pltpu.MemorySpace.VMEM)
    out_fold = pl.pallas_call(
        avwgcn_kernel,
        out_shape=jax.ShapeDtypeStruct((N, BO), f32),
        in_specs=[vmem_spec] * 12,
        out_specs=vmem_spec,
    )(xbc, x_fold, supports_flat, cheb_flat, w_big, bias_fold,
      wi_bd, bi_fold, wg_bd, bg_fold, w1_big, w2_big)

    # un-fold the lane-folded output slab back to (B, N, DIM_OUT)
    return out_fold.reshape(N, B, DIM_OUT).transpose(1, 0, 2)


def ref_forward(x, node_emb, L_learned, cheb_polys, params):
    """Pure-JAX reference reproducing the PyTorch forward exactly."""
    sup = [jnp.eye(N, dtype=jnp.float32), L_learned]
    for k in range(2, CHEB_K):
        sup.append(2.0 * L_learned @ sup[-1] - sup[-2])
    supports = jnp.stack(sup, 0)
    weights = jnp.einsum('nd,dkio->nkio', node_emb, params['weights_pool'])
    bias = node_emb @ params['bias_pool']
    x_g = jnp.einsum('knm,bmc->bknc', supports, x).transpose(0, 2, 1, 3)
    x_gconv0 = jnp.einsum('bnki,nkio->bno', x_g, weights) + bias
    x2 = x @ params['w_init'] + params['b_init']
    x_g1 = jnp.einsum('knm,bmc->bknc', cheb_polys, x2).transpose(0, 2, 1, 3)
    x_g1 = x_g1.reshape(B, N, CHEB_K * DIM_OUT)
    x_gconv1 = x_g1 @ params['w_g'] + params['b_g']

    def leaky(v):
        return jnp.where(v > 0, v, 0.01 * v)

    def se(h, w1, w2):  # h: (B, N, O)  (== (B, O, N) in torch, channels-last here)
        pooled = h.mean(axis=1)                                        # (B, O)
        y = jax.nn.sigmoid(jnp.maximum(pooled @ w1, 0.0) @ w2)         # (B, O)
        return h * y[:, None, :]

    h0, h1 = leaky(x_gconv0), leaky(x_gconv1)
    return se(h0, params['g1_w1'], params['g1_w2']) + se(h1, params['g2_w1'], params['g2_w2'])


if __name__ == "__main__":
    key = jax.random.PRNGKey(0)
    ks = jax.random.split(key, 16)
    x = jax.random.normal(ks[0], (B, N, DIM_IN), jnp.float32)
    node_emb = jax.random.normal(ks[1], (N, EMBED_DIM), jnp.float32)

    # symmetric, scaled "Laplacians" (learned + fixed Chebyshev basis)
    a = jax.random.normal(ks[2], (N, N), jnp.float32)
    L_learned = (a + a.T) / (2.0 * N)
    b_m = jax.random.normal(ks[3], (N, N), jnp.float32)
    L_tilde = (b_m + b_m.T) / (2.0 * N)
    cheb_list = [jnp.eye(N, dtype=jnp.float32), L_tilde]
    for k in range(2, CHEB_K):
        cheb_list.append(2.0 * L_tilde @ cheb_list[-1] - cheb_list[-2])
    cheb_polys = jnp.stack(cheb_list, 0)

    params = dict(
        weights_pool=0.1 * jax.random.normal(ks[4], (EMBED_DIM, CHEB_K, DIM_IN, DIM_OUT), jnp.float32),
        bias_pool=0.1 * jax.random.normal(ks[5], (EMBED_DIM, DIM_OUT), jnp.float32),
        w_init=0.1 * jax.random.normal(ks[6], (DIM_IN, DIM_OUT), jnp.float32),
        b_init=0.1 * jax.random.normal(ks[7], (1, DIM_OUT), jnp.float32),
        w_g=0.1 * jax.random.normal(ks[8], (CHEB_K * DIM_OUT, DIM_OUT), jnp.float32),
        b_g=0.1 * jax.random.normal(ks[9], (1, DIM_OUT), jnp.float32),
        g1_w1=0.1 * jax.random.normal(ks[10], (DIM_OUT, HIDDEN), jnp.float32),
        g1_w2=0.1 * jax.random.normal(ks[11], (HIDDEN, DIM_OUT), jnp.float32),
        g2_w1=0.1 * jax.random.normal(ks[12], (DIM_OUT, HIDDEN), jnp.float32),
        g2_w2=0.1 * jax.random.normal(ks[13], (HIDDEN, DIM_OUT), jnp.float32),
    )

    out = avwgcn_forward(x, node_emb, L_learned, cheb_polys, params)
    out = jax.block_until_ready(out)

    ref = ref_forward(x, node_emb, L_learned, cheb_polys, params)
    np.testing.assert_allclose(np.asarray(out), np.asarray(ref), rtol=2e-3, atol=2e-3)
    print("KERNEL_OK")
</pallas_src>

<mosaic_0001>
module attributes {stable_mosaic.version = 11 : i64} {
  func.func @avwgcn_kernel(%arg0: memref<16x256xf32, #tpu.memory_space<vmem>>, %arg1: memref<16x8xf32, #tpu.memory_space<vmem>>, %arg2: memref<48x16xf32, #tpu.memory_space<vmem>>, %arg3: memref<48x16xf32, #tpu.memory_space<vmem>>, %arg4: memref<48x256xf32, #tpu.memory_space<vmem>>, %arg5: memref<16x64xf32, #tpu.memory_space<vmem>>, %arg6: memref<8x64xf32, #tpu.memory_space<vmem>>, %arg7: memref<1x64xf32, #tpu.memory_space<vmem>>, %arg8: memref<3x64x64xf32, #tpu.memory_space<vmem>>, %arg9: memref<1x64xf32, #tpu.memory_space<vmem>>, %arg10: memref<128x32xf32, #tpu.memory_space<vmem>>, %arg11: memref<32x128xf32, #tpu.memory_space<vmem>>, %arg12: memref<16x64xf32, #tpu.memory_space<vmem>>) attributes {dimension_semantics = [], scalar_prefetch = 0 : i64, scratch_operands = 0 : i64, tpu.core_type = #tpu.core_type<tc>} {
    %c0 = arith.constant 0 : index
    %c0_0 = arith.constant 0 : index
    %0 = vector.load %arg2[%c0, %c0_0] : memref<48x16xf32, #tpu.memory_space<vmem>>, vector<48x16xf32>
    %c0_1 = arith.constant 0 : index
    %c0_2 = arith.constant 0 : index
    %1 = vector.load %arg0[%c0_1, %c0_2] : memref<16x256xf32, #tpu.memory_space<vmem>>, vector<16x256xf32>
    %cst = arith.constant dense<0.000000e+00> : vector<48x256xf32>
    %2 = tpu.matmul %0, %1, %cst {dimension_numbers = #tpu.dot_dimension_numbers<[1], [0], [0], [1], [0, 0, 1, 1], [], []>} : vector<48x16xf32>, vector<16x256xf32>, vector<48x256xf32> -> vector<48x256xf32>
    %c0_3 = arith.constant 0 : index
    %c0_4 = arith.constant 0 : index
    %3 = vector.load %arg4[%c0_3, %c0_4] : memref<48x256xf32, #tpu.memory_space<vmem>>, vector<48x256xf32>
    %4 = arith.mulf %2, %3 : vector<48x256xf32>
    %5 = vector.extract_strided_slice %4 {offsets = [0, 0], sizes = [48, 64], strides = [1, 1]} : vector<48x256xf32> to vector<48x64xf32>
    %6 = vector.extract_strided_slice %4 {offsets = [0, 64], sizes = [48, 64], strides = [1, 1]} : vector<48x256xf32> to vector<48x64xf32>
    %7 = arith.addf %5, %6 : vector<48x64xf32>
    %8 = vector.extract_strided_slice %4 {offsets = [0, 128], sizes = [48, 64], strides = [1, 1]} : vector<48x256xf32> to vector<48x64xf32>
    %9 = arith.addf %7, %8 : vector<48x64xf32>
    %10 = vector.extract_strided_slice %4 {offsets = [0, 192], sizes = [48, 64], strides = [1, 1]} : vector<48x256xf32> to vector<48x64xf32>
    %11 = arith.addf %9, %10 : vector<48x64xf32>
    %12 = vector.extract_strided_slice %11 {offsets = [0, 0], sizes = [16, 64], strides = [1, 1]} : vector<48x64xf32> to vector<16x64xf32>
    %13 = vector.extract_strided_slice %11 {offsets = [16, 0], sizes = [16, 64], strides = [1, 1]} : vector<48x64xf32> to vector<16x64xf32>
    %14 = arith.addf %12, %13 : vector<16x64xf32>
    %15 = vector.extract_strided_slice %11 {offsets = [32, 0], sizes = [16, 64], strides = [1, 1]} : vector<48x64xf32> to vector<16x64xf32>
    %16 = arith.addf %14, %15 : vector<16x64xf32>
    %c0_5 = arith.constant 0 : index
    %c0_6 = arith.constant 0 : index
    %17 = vector.load %arg5[%c0_5, %c0_6] : memref<16x64xf32, #tpu.memory_space<vmem>>, vector<16x64xf32>
    %18 = arith.addf %16, %17 : vector<16x64xf32>
    %c0_7 = arith.constant 0 : index
    %c0_8 = arith.constant 0 : index
    %19 = vector.load %arg1[%c0_7, %c0_8] : memref<16x8xf32, #tpu.memory_space<vmem>>, vector<16x8xf32>
    %c0_9 = arith.constant 0 : index
    %c0_10 = arith.constant 0 : index
    %20 = vector.load %arg6[%c0_9, %c0_10] : memref<8x64xf32, #tpu.memory_space<vmem>>, vector<8x64xf32>
    %cst_11 = arith.constant dense<0.000000e+00> : vector<16x64xf32>
    %21 = tpu.matmul %19, %20, %cst_11 {dimension_numbers = #tpu.dot_dimension_numbers<[1], [0], [0], [1], [0, 0, 1, 1], [], []>} : vector<16x8xf32>, vector<8x64xf32>, vector<16x64xf32> -> vector<16x64xf32>
    %c0_12 = arith.constant 0 : index
    %c0_13 = arith.constant 0 : index
    %22 = vector.load %arg7[%c0_12, %c0_13] : memref<1x64xf32, #tpu.memory_space<vmem>>, vector<1x64xf32>
    %23 = vector.broadcast %22 : vector<1x64xf32> to vector<16x64xf32>
    %24 = arith.addf %21, %23 : vector<16x64xf32>
    %c0_14 = arith.constant 0 : index
    %c0_15 = arith.constant 0 : index
    %25 = vector.load %arg3[%c0_14, %c0_15] : memref<48x16xf32, #tpu.memory_space<vmem>>, vector<48x16xf32>
    %cst_16 = arith.constant dense<0.000000e+00> : vector<48x64xf32>
    %26 = tpu.matmul %25, %24, %cst_16 {dimension_numbers = #tpu.dot_dimension_numbers<[1], [0], [0], [1], [0, 0, 1, 1], [], []>} : vector<48x16xf32>, vector<16x64xf32>, vector<48x64xf32> -> vector<48x64xf32>
    %27 = vector.extract_strided_slice %26 {offsets = [0, 0], sizes = [16, 64], strides = [1, 1]} : vector<48x64xf32> to vector<16x64xf32>
    %c0_17 = arith.constant 0 : index
    %c0_18 = arith.constant 0 : index
    %c0_19 = arith.constant 0 : index
    %28 = vector.load %arg8[%c0_17, %c0_18, %c0_19] : memref<3x64x64xf32, #tpu.memory_space<vmem>>, vector<1x64x64xf32>
    %29 = vector.shape_cast %28 : vector<1x64x64xf32> to vector<64x64xf32>
    %cst_20 = arith.constant dense<0.000000e+00> : vector<16x64xf32>
    %30 = tpu.matmul %27, %29, %cst_20 {dimension_numbers = #tpu.dot_dimension_numbers<[1], [0], [0], [1], [0, 0, 1, 1], [], []>} : vector<16x64xf32>, vector<64x64xf32>, vector<16x64xf32> -> vector<16x64xf32>
    %31 = vector.extract_strided_slice %26 {offsets = [16, 0], sizes = [16, 64], strides = [1, 1]} : vector<48x64xf32> to vector<16x64xf32>
    %c1 = arith.constant 1 : index
    %c0_21 = arith.constant 0 : index
    %c0_22 = arith.constant 0 : index
    %32 = vector.load %arg8[%c1, %c0_21, %c0_22] : memref<3x64x64xf32, #tpu.memory_space<vmem>>, vector<1x64x64xf32>
    %33 = vector.shape_cast %32 : vector<1x64x64xf32> to vector<64x64xf32>
    %cst_23 = arith.constant dense<0.000000e+00> : vector<16x64xf32>
    %34 = tpu.matmul %31, %33, %cst_23 {dimension_numbers = #tpu.dot_dimension_numbers<[1], [0], [0], [1], [0, 0, 1, 1], [], []>} : vector<16x64xf32>, vector<64x64xf32>, vector<16x64xf32> -> vector<16x64xf32>
    %35 = arith.addf %30, %34 : vector<16x64xf32>
    %36 = vector.extract_strided_slice %26 {offsets = [32, 0], sizes = [16, 64], strides = [1, 1]} : vector<48x64xf32> to vector<16x64xf32>
    %c2 = arith.constant 2 : index
    %c0_24 = arith.constant 0 : index
    %c0_25 = arith.constant 0 : index
    %37 = vector.load %arg8[%c2, %c0_24, %c0_25] : memref<3x64x64xf32, #tpu.memory_space<vmem>>, vector<1x64x64xf32>
    %38 = vector.shape_cast %37 : vector<1x64x64xf32> to vector<64x64xf32>
    %cst_26 = arith.constant dense<0.000000e+00> : vector<16x64xf32>
    %39 = tpu.matmul %36, %38, %cst_26 {dimension_numbers = #tpu.dot_dimension_numbers<[1], [0], [0], [1], [0, 0, 1, 1], [], []>} : vector<16x64xf32>, vector<64x64xf32>, vector<16x64xf32> -> vector<16x64xf32>
    %40 = arith.addf %35, %39 : vector<16x64xf32>
    %c0_27 = arith.constant 0 : index
    %c0_28 = arith.constant 0 : index
    %41 = vector.load %arg9[%c0_27, %c0_28] : memref<1x64xf32, #tpu.memory_space<vmem>>, vector<1x64xf32>
    %42 = vector.broadcast %41 : vector<1x64xf32> to vector<16x64xf32>
    %43 = arith.addf %40, %42 : vector<16x64xf32>
    %cst_29 = arith.constant 0.000000e+00 : f32
    %44 = vector.broadcast %cst_29 : f32 to vector<16x64xf32>
    %45 = arith.cmpf ogt, %18, %44 : vector<16x64xf32>
    %cst_30 = arith.constant 0.00999999977 : f32
    %46 = vector.broadcast %cst_30 : f32 to vector<16x64xf32>
    %47 = arith.mulf %46, %18 : vector<16x64xf32>
    %48 = arith.select %45, %18, %47 : vector<16x64xi1>, vector<16x64xf32>
    %cst_31 = arith.constant 0.000000e+00 : f32
    %49 = vector.broadcast %cst_31 : f32 to vector<16x64xf32>
    %50 = arith.cmpf ogt, %43, %49 : vector<16x64xf32>
    %cst_32 = arith.constant 0.00999999977 : f32
    %51 = vector.broadcast %cst_32 : f32 to vector<16x64xf32>
    %52 = arith.mulf %51, %43 : vector<16x64xf32>
    %53 = arith.select %50, %43, %52 : vector<16x64xi1>, vector<16x64xf32>
    %cst_33 = arith.constant dense<0.000000e+00> : vector<64xf32>
    %54 = vector.multi_reduction <add>, %48, %cst_33 [0] : vector<16x64xf32> to vector<64xf32>
    %55 = vector.shape_cast %54 : vector<64xf32> to vector<1x64xf32>
    %cst_34 = arith.constant 1.600000e+01 : f32
    %56 = vector.broadcast %cst_34 : f32 to vector<1x64xf32>
    %57 = arith.divf %55, %56 : vector<1x64xf32>
    %cst_35 = arith.constant dense<0.000000e+00> : vector<64xf32>
    %58 = vector.multi_reduction <add>, %53, %cst_35 [0] : vector<16x64xf32> to vector<64xf32>
    %59 = vector.shape_cast %58 : vector<64xf32> to vector<1x64xf32>
    %cst_36 = arith.constant 1.600000e+01 : f32
    %60 = vector.broadcast %cst_36 : f32 to vector<1x64xf32>
    %61 = arith.divf %59, %60 : vector<1x64xf32>
    %62 = tpu.concatenate %57, %61 in 1 : vector<1x64xf32>, vector<1x64xf32> -> vector<1x128xf32>
    %c0_37 = arith.constant 0 : index
    %c0_38 = arith.constant 0 : index
    %63 = vector.load %arg10[%c0_37, %c0_38] : memref<128x32xf32, #tpu.memory_space<vmem>>, vector<128x32xf32>
    %cst_39 = arith.constant dense<0.000000e+00> : vector<1x32xf32>
    %64 = tpu.matmul %62, %63, %cst_39 {dimension_numbers = #tpu.dot_dimension_numbers<[1], [0], [0], [1], [0, 0, 1, 1], [], []>} : vector<1x128xf32>, vector<128x32xf32>, vector<1x32xf32> -> vector<1x32xf32>
    %cst_40 = arith.constant 0.000000e+00 : f32
    %65 = vector.broadcast %cst_40 : f32 to vector<1x32xf32>
    %66 = arith.maximumf %64, %65 : vector<1x32xf32>
    %c0_41 = arith.constant 0 : index
    %c0_42 = arith.constant 0 : index
    %67 = vector.load %arg11[%c0_41, %c0_42] : memref<32x128xf32, #tpu.memory_space<vmem>>, vector<32x128xf32>
    %cst_43 = arith.constant dense<0.000000e+00> : vector<1x128xf32>
    %68 = tpu.matmul %66, %67, %cst_43 {dimension_numbers = #tpu.dot_dimension_numbers<[1], [0], [0], [1], [0, 0, 1, 1], [], []>} : vector<1x32xf32>, vector<32x128xf32>, vector<1x128xf32> -> vector<1x128xf32>
    %69 = arith.negf %68 : vector<1x128xf32>
    %70 = math.exp %69 : vector<1x128xf32>
    %cst_44 = arith.constant 1.000000e+00 : f32
    %71 = vector.broadcast %cst_44 : f32 to vector<1x128xf32>
    %72 = arith.addf %71, %70 : vector<1x128xf32>
    %73 = arith.divf %71, %72 : vector<1x128xf32>
    %74 = vector.extract_strided_slice %73 {offsets = [0, 0], sizes = [1, 64], strides = [1, 1]} : vector<1x128xf32> to vector<1x64xf32>
    %75 = vector.broadcast %74 : vector<1x64xf32> to vector<16x64xf32>
    %76 = arith.mulf %48, %75 : vector<16x64xf32>
    %77 = vector.extract_strided_slice %73 {offsets = [0, 64], sizes = [1, 64], strides = [1, 1]} : vector<1x128xf32> to vector<1x64xf32>
    %78 = vector.broadcast %77 : vector<1x64xf32> to vector<16x64xf32>
    %79 = arith.mulf %53, %78 : vector<16x64xf32>
    %80 = arith.addf %76, %79 : vector<16x64xf32>
    %c0_45 = arith.constant 0 : index
    %c0_46 = arith.constant 0 : index
    %81 = vector.load %arg12[%c0_45, %c0_46] : memref<16x64xf32, #tpu.memory_space<vmem>>, vector<16x64xf32>
    tpu.vector_store %arg12[%c0_45, %c0_46], %80 {strides = array<i32>} : memref<16x64xf32, #tpu.memory_space<vmem>>, vector<16x64xf32>,
    return
  }
}

</mosaic_0001>

<llo_original>
// kernel: tile.19
$region0: #{tile.19}
  %s0 = inlined_call_operand.vmem [shape: f32[16,2,32], index: 0, kind: input, shape index: {}]
  %s1 = inlined_call_operand.vmem [shape: f32[16,64], index: 1, kind: output, shape index: {}]
  $region1: #{tile.19} parent=0
    #allocation0 [shape = 'u8[65536]{0}', space=vmem, size = 0x10000, scoped, tag = 'scoped mem for input reshape']
    %s3 = sshll.u32 1, 2
    %s4 = ssub.s32 %s3, 1
    %s5 = smul.addr 2, 15
    %s6 = scalar_lea.vmem %s0, %s5
    %v7 = vld [vmem:[%s6] sm:%s4]
    %s8 = scalar_lea.vmem [#allocation0], 120
    %9 = vst [vmem:[%s8] sm:%s4] %v7
    %s10 = smul.addr 2, 14
    %s11 = scalar_lea.vmem %s0, %s10
    %v12 = vld [vmem:[%s11] sm:%s4]
    %s13 = scalar_lea.vmem [#allocation0], 112
    %14 = vst [vmem:[%s13] sm:%s4] %v12
    %s15 = smul.addr 2, 13
    %s16 = scalar_lea.vmem %s0, %s15
    %v17 = vld [vmem:[%s16] sm:%s4]
    %s18 = scalar_lea.vmem [#allocation0], 104
    %19 = vst [vmem:[%s18] sm:%s4] %v17
    %s20 = smul.addr 2, 12
    %s21 = scalar_lea.vmem %s0, %s20
    %v22 = vld [vmem:[%s21] sm:%s4]
    %s23 = scalar_lea.vmem [#allocation0], 96
    %24 = vst [vmem:[%s23] sm:%s4] %v22
    %s25 = smul.addr 2, 11
    %s26 = scalar_lea.vmem %s0, %s25
    %v27 = vld [vmem:[%s26] sm:%s4]
    %s28 = scalar_lea.vmem [#allocation0], 88
    %29 = vst [vmem:[%s28] sm:%s4] %v27
    %s30 = smul.addr 2, 10
    %s31 = scalar_lea.vmem %s0, %s30
    %v32 = vld [vmem:[%s31] sm:%s4]
    %s33 = scalar_lea.vmem [#allocation0], 80
    %34 = vst [vmem:[%s33] sm:%s4] %v32
    %s35 = smul.addr 2, 9
    %s36 = scalar_lea.vmem %s0, %s35
    %v37 = vld [vmem:[%s36] sm:%s4]
    %s38 = scalar_lea.vmem [#allocation0], 72
    %39 = vst [vmem:[%s38] sm:%s4] %v37
    %s40 = smul.addr 2, 8
    %s41 = scalar_lea.vmem %s0, %s40
    %v42 = vld [vmem:[%s41] sm:%s4]
    %s43 = scalar_lea.vmem [#allocation0], 64
    %44 = vst [vmem:[%s43] sm:%s4] %v42
    %s45 = smul.addr 2, 7
    %s46 = scalar_lea.vmem %s0, %s45
    %v47 = vld [vmem:[%s46] sm:%s4]
    %s48 = scalar_lea.vmem [#allocation0], 56
    %49 = vst [vmem:[%s48] sm:%s4] %v47
    %s50 = smul.addr 2, 6
    %s51 = scalar_lea.vmem %s0, %s50
    %v52 = vld [vmem:[%s51] sm:%s4]
    %s53 = scalar_lea.vmem [#allocation0], 48
    %54 = vst [vmem:[%s53] sm:%s4] %v52
    %s55 = smul.addr 2, 5
    %s56 = scalar_lea.vmem %s0, %s55
    %v57 = vld [vmem:[%s56] sm:%s4]
    %s58 = scalar_lea.vmem [#allocation0], 40
    %59 = vst [vmem:[%s58] sm:%s4] %v57
    %s60 = smul.addr 2, 4
    %s61 = scalar_lea.vmem %s0, %s60
    %v62 = vld [vmem:[%s61] sm:%s4]
    %s63 = scalar_lea.vmem [#allocation0], 32
    %64 = vst [vmem:[%s63] sm:%s4] %v62
    %s65 = smul.addr 2, 3
    %s66 = scalar_lea.vmem %s0, %s65
    %v67 = vld [vmem:[%s66] sm:%s4]
    %s68 = scalar_lea.vmem [#allocation0], 24
    %69 = vst [vmem:[%s68] sm:%s4] %v67
    %s70 = smul.addr 2, 2
    %s71 = scalar_lea.vmem %s0, %s70
    %v72 = vld [vmem:[%s71] sm:%s4]
    %s73 = scalar_lea.vmem [#allocation0], 16
    %74 = vst [vmem:[%s73] sm:%s4] %v72
    %s75 = scalar_lea.vmem %s0, 2
    %v76 = vld [vmem:[%s75] sm:%s4]
    %s77 = scalar_lea.vmem [#allocation0], 8
    %78 = vst [vmem:[%s77] sm:%s4] %v76
    %v79 = vld [vmem:[%s0] sm:%s4]
    %80 = vst [vmem:[#allocation0] sm:%s4] %v79
    %v81 = vld [vmem:[#allocation0] ss:$8 sm:$0xf]
    %v82 = vld [vmem:[#allocation0] ss:$8 sm:$0xf0]
    %vm83 = vcmask 1047556
    %v84 = vsel %vm83, %v82, %v81
    %vm85 = vcmask 261120
    %86 = vst.msk [vmem:[%s1] sm:$0xff] %vm85, %v84
    %s87 = scalar_lea.vmem [#allocation0], 64
    %v88 = vld [vmem:[%s87] ss:$8 sm:$0xf]
    %s89 = scalar_lea.vmem [#allocation0], 64
    %v90 = vld [vmem:[%s89] ss:$8 sm:$0xf0]
    %vm91 = vcmask 1047556
    %v92 = vsel %vm91, %v90, %v88
    %vm93 = vcmask 261120
    %s94 = scalar_lea.vmem %s1, 8
    %95 = vst.msk [vmem:[%s94] sm:$0xff] %vm93, %v92
    %s96 = scalar_lea.vmem [#allocation0], 1
    %v97 = vld [vmem:[%s96] ss:$8 sm:$0xf]
    %s98 = scalar_lea.vmem [#allocation0], 1
    %v99 = vld [vmem:[%s98] ss:$8 sm:$0xf0]
    %vm100 = vcmask 1047556
    %v101 = vsel %vm100, %v99, %v97
    %102 = vrot.lane.b32.xlu0 %v101, 32
    %v103 = vpop.permute.xlu0 %102
    %vm104 = vcmask 523520
    %105 = vst.msk [vmem:[%s1] sm:$0xff] %vm104, %v103
    %s106 = scalar_lea.vmem [#allocation0], 65
    %v107 = vld [vmem:[%s106] ss:$8 sm:$0xf]
    %s108 = scalar_lea.vmem [#allocation0], 65
    %v109 = vld [vmem:[%s108] ss:$8 sm:$0xf0]
    %vm110 = vcmask 1047556
    %v111 = vsel %vm110, %v109, %v107
    %112 = vrot.lane.b32.xlu0 %v111, 32
    %v113 = vpop.permute.xlu0 %112
    %vm114 = vcmask 523520
    %s115 = scalar_lea.vmem %s1, 8
    %116 = vst.msk [vmem:[%s115] sm:$0xff] %vm114, %v113

// kernel: avwgcn_forward.1
$region0: #{avwgcn_forward.1}
  #allocation0 [shape = 'u32[]', space=smem, size = 0x4, offset = 0x4, fixed_abs, tag = 'smem constant byte address 0x4 - core index']
  #allocation1 [shape = 'u32[144,128]{1,0:T(1,128)}', space=vmem, size = 0x12000, scoped, tag = 'internal scratch']
  %s0 = inlined_call_operand.vmem [shape: f32[16,256], index: 0, kind: input, shape index: {}]
  %s1 = inlined_call_operand.vmem [shape: f32[16,8], index: 1, kind: input, shape index: {}]
  %s2 = inlined_call_operand.vmem [shape: f32[48,16], index: 2, kind: input, shape index: {}]
  %s3 = inlined_call_operand.vmem [shape: f32[48,16], index: 3, kind: input, shape index: {}]
  %s4 = inlined_call_operand.vmem [shape: f32[48,256], index: 4, kind: input, shape index: {}]
  %s5 = inlined_call_operand.vmem [shape: f32[16,64], index: 5, kind: input, shape index: {}]
  %s6 = inlined_call_operand.vmem [shape: f32[8,64], index: 6, kind: input, shape index: {}]
  %s7 = inlined_call_operand.vmem [shape: f32[1,64], index: 7, kind: input, shape index: {}]
  %s8 = inlined_call_operand.vmem [shape: f32[3,64,64], index: 8, kind: input, shape index: {}]
  %s9 = inlined_call_operand.vmem [shape: f32[1,64], index: 9, kind: input, shape index: {}]
  %s10 = inlined_call_operand.vmem [shape: f32[128,32], index: 10, kind: input, shape index: {}]
  %s11 = inlined_call_operand.vmem [shape: f32[32,128], index: 11, kind: input, shape index: {}]
  %s12 = inlined_call_operand.vmem [shape: f32[16,64], index: 12, kind: output, shape index: {}]
  %s13 = sld [smem:[#allocation0]]
  $region58: #{avwgcn_forward.1} parent=0
    _
  %s15 = ssub.s32 1, %s13
  %s16 = scalar_select 0, %s15, %s13
  // Predicated region
  $region2: #{avwgcn_forward.1} parent=0 // pred_check
    _
  $region3: #{avwgcn_forward.1} parent=0 // pred_check_branch
    %18 = sbr.rel (0) target = $region5
  $region4: #{avwgcn_forward.1} parent=0 // pred_region
    _
  $region5: #{avwgcn_forward.1} parent=0 // pred_fallthru
    _
  // Predicated region
  $region6: #{avwgcn_forward.1} parent=0 // pred_check
    _
  $region7: #{avwgcn_forward.1} parent=0 // pred_check_branch
    %20 = sbr.rel (0) target = $region9
  $region8: #{avwgcn_forward.1} parent=0 // pred_region
    _
  $region9: #{avwgcn_forward.1} parent=0 // pred_fallthru
    _
  // Predicated region
  $region10: #{avwgcn_forward.1} parent=0 // pred_check
    _
  $region11: #{avwgcn_forward.1} parent=0 // pred_check_branch
    %22 = sbr.rel (0) target = $region13
  $region12: #{avwgcn_forward.1} parent=0 // pred_region
    _
  $region13: #{avwgcn_forward.1} parent=0 // pred_fallthru
    _
  // Predicated region
  $region14: #{avwgcn_forward.1} parent=0 // pred_check
    _
  $region15: #{avwgcn_forward.1} parent=0 // pred_check_branch
    %24 = sbr.rel (0) target = $region17
  $region16: #{avwgcn_forward.1} parent=0 // pred_region
    _
  $region17: #{avwgcn_forward.1} parent=0 // pred_fallthru
    _
  // Predicated region
  $region18: #{avwgcn_forward.1} parent=0 // pred_check
    _
  $region19: #{avwgcn_forward.1} parent=0 // pred_check_branch
    %26 = sbr.rel (0) target = $region21
  $region20: #{avwgcn_forward.1} parent=0 // pred_region
    _
  $region21: #{avwgcn_forward.1} parent=0 // pred_fallthru
    _
  // Predicated region
  $region22: #{avwgcn_forward.1} parent=0 // pred_check
    _
  $region23: #{avwgcn_forward.1} parent=0 // pred_check_branch
    %28 = sbr.rel (0) target = $region25
  $region24: #{avwgcn_forward.1} parent=0 // pred_region
    _
  $region25: #{avwgcn_forward.1} parent=0 // pred_fallthru
    _
  // Predicated region
  $region26: #{avwgcn_forward.1} parent=0 // pred_check
    _
  $region27: #{avwgcn_forward.1} parent=0 // pred_check_branch
    %30 = sbr.rel (0) target = $region29
  $region28: #{avwgcn_forward.1} parent=0 // pred_region
    _
  $region29: #{avwgcn_forward.1} parent=0 // pred_fallthru
    _
  // Predicated region
  $region30: #{avwgcn_forward.1} parent=0 // pred_check
    _
  $region31: #{avwgcn_forward.1} parent=0 // pred_check_branch
    %32 = sbr.rel (0) target = $region33
  $region32: #{avwgcn_forward.1} parent=0 // pred_region
    _
  $region33: #{avwgcn_forward.1} parent=0 // pred_fallthru
    _
  // Predicated region
  $region34: #{avwgcn_forward.1} parent=0 // pred_check
    _
  $region35: #{avwgcn_forward.1} parent=0 // pred_check_branch
    %34 = sbr.rel (0) target = $region37
  $region36: #{avwgcn_forward.1} parent=0 // pred_region
    _
  $region37: #{avwgcn_forward.1} parent=0 // pred_fallthru
    _
  // Predicated region
  $region38: #{avwgcn_forward.1} parent=0 // pred_check
    _
  $region39: #{avwgcn_forward.1} parent=0 // pred_check_branch
    %36 = sbr.rel (0) target = $region41
  $region40: #{avwgcn_forward.1} parent=0 // pred_region
    _
  $region41: #{avwgcn_forward.1} parent=0 // pred_fallthru
    _
  // Predicated region
  $region42: #{avwgcn_forward.1} parent=0 // pred_check
    _
  $region43: #{avwgcn_forward.1} parent=0 // pred_check_branch
    %38 = sbr.rel (0) target = $region45
  $region44: #{avwgcn_forward.1} parent=0 // pred_region
    _
  $region45: #{avwgcn_forward.1} parent=0 // pred_fallthru
    _
  // Predicated region
  $region46: #{avwgcn_forward.1} parent=0 // pred_check
    _
  $region47: #{avwgcn_forward.1} parent=0 // pred_check_branch
    %40 = sbr.rel (0) target = $region49
  $region48: #{avwgcn_forward.1} parent=0 // pred_region
    _
  $region49: #{avwgcn_forward.1} parent=0 // pred_fallthru
    _
  %v41 = vld [vmem:[%s2] sm:$0xff]
  %v42 = vld [vmem:[%s2 + $0x8] sm:$0xff]
  %v43 = vld [vmem:[%s2 + $0x10] sm:$0xff]
  %v44 = vld [vmem:[%s2 + $0x18] sm:$0xff]
  %v45 = vld [vmem:[%s2 + $0x20] sm:$0xff]
  %v46 = vld [vmem:[%s2 + $0x28] sm:$0xff]
  %v47 = vld [vmem:[%s0] sm:$0xff]
  %v48 = vld [vmem:[%s0 + $0x8] sm:$0xff]
  %v49 = vld [vmem:[%s0 + $0x10] sm:$0xff]
  %v50 = vld [vmem:[%s0 + $0x18] sm:$0xff]
  %vm51 = vcmask 130048
  %v53 = vsel %vm51, %v41, 0
  %v56 = vsel %vm51, %v42, 0
  %v59 = vsel %vm51, %v43, 0
  %v62 = vsel %vm51, %v44, 0
  %v65 = vsel %vm51, %v45, 0
  %v68 = vsel %vm51, %v46, 0
  %70 = vmatprep.subr.mxu0 0.0
  %71 = vmatpush1.msra.mxu0 0.0
  %72 = vmatprep.subr.mxu0 0.0
  %73 = vmatpush1.msra.mxu0 0.0
  %74 = vmatprep.subr.mxu0 0.0
  %75 = vmatpush1.msra.mxu0 0.0
  %76 = vmatprep.subr.mxu0 0.0
  %77 = vmatpush1.msra.mxu0 0.0
  %78 = vmatprep.subr.mxu0 0.0
  %79 = vmatpush1.msra.mxu0 0.0
  %80 = vmatprep.subr.mxu0 0.0
  %81 = vmatpush1.msra.mxu0 0.0
  %82 = vmatprep.subr.mxu0 0.0
  %83 = vmatpush1.msra.mxu0 0.0
  %84 = vmatprep.subr.mxu0 0.0
  %85 = vmatpush1.msra.mxu0 0.0
  %86 = vmatprep.subr.mxu0 0.0
  %87 = vmatpush1.msra.mxu0 0.0
  %88 = vmatprep.subr.mxu0 0.0
  %89 = vmatpush1.msra.mxu0 0.0
  %90 = vmatprep.subr.mxu0 0.0
  %91 = vmatpush1.msra.mxu0 0.0
  %92 = vmatprep.subr.mxu0 0.0
  %93 = vmatpush1.msra.mxu0 0.0
  %94 = vmatprep.subr.mxu0 0.0
  %95 = vmatpush1.msra.mxu0 0.0
  %96 = vmatprep.subr.mxu0 0.0
  %97 = vmatpush1.msra.mxu0 0.0
  %98 = vmatprep.subr.mxu0 %v50
  %99 = vmatpush1.msra.mxu0 %v49
  %100 = vmatprep.subr.mxu0 %v48
  %101 = vmatpush1.msra.mxu0 %v47
  %102 = vmatprep.subr.mxu0 0.0
  %103 = vmatpush2.msra.mxu0 0.0
  %104 = vmatprep.subr.mxu0 0.0
  %105 = vmatpush2.msra.mxu0 0.0
  %106 = vmatprep.subr.mxu0 0.0
  %107 = vmatpush2.msra.mxu0 0.0
  %108 = vmatprep.subr.mxu0 0.0
  %109 = vmatpush2.msra.mxu0 0.0
  %110 = vmatprep.subr.mxu0 0.0
  %111 = vmatpush2.msra.mxu0 0.0
  %112 = vmatprep.subr.mxu0 0.0
  %113 = vmatpush2.msra.mxu0 0.0
  %114 = vmatprep.subr.mxu0 0.0
  %115 = vmatpush2.msra.mxu0 0.0
  %116 = vmatprep.subr.mxu0 0.0
  %117 = vmatpush2.msra.mxu0 0.0
  %118 = vmatprep.subr.mxu0 0.0
  %119 = vmatpush2.msra.mxu0 0.0
  %120 = vmatprep.subr.mxu0 0.0
  %121 = vmatpush2.msra.mxu0 0.0
  %122 = vmatprep.subr.mxu0 0.0
  %123 = vmatpush2.msra.mxu0 0.0
  %124 = vmatprep.subr.mxu0 0.0
  %125 = vmatpush2.msra.mxu0 0.0
  %126 = vmatprep.subr.mxu0 0.0
  %127 = vmatpush2.msra.mxu0 0.0
  %128 = vmatprep.subr.mxu0 0.0
  %129 = vmatpush2.msra.mxu0 0.0
  %130 = vmatprep.subr.mxu0 0.0
  %131 = vmatpush2.msra.mxu0 0.0
  %132 = vmatprep.subr.mxu0 0.0
  %133 = vmatpush2.msra.mxu0 0.0
  %134 = vmatprep.mubr.f32.mxu0 0.0
  %135 = vmatmul.mubr.f32.gmra.mxu0 %v53
  %v136 = vpop.f32.mrf.mxu0
  %v137 = vadd.f32 0.0, %v136
  %v138 = vpop.f32.mrf.mxu0
  %v139 = vadd.f32 0.0, %v138
  %140 = vmatprep.mubr.f32.mxu0 0.0
  %141 = vmatmul.mubr.f32.gmra.mxu0 %v56
  %v142 = vpop.f32.mrf.mxu0
  %v143 = vadd.f32 0.0, %v142
  %v144 = vpop.f32.mrf.mxu0
  %v145 = vadd.f32 0.0, %v144
  %146 = vmatprep.mubr.f32.mxu0 0.0
  %147 = vmatmul.mubr.f32.gmra.mxu0 %v59
  %v148 = vpop.f32.mrf.mxu0
  %v149 = vadd.f32 0.0, %v148
  %v150 = vpop.f32.mrf.mxu0
  %v151 = vadd.f32 0.0, %v150
  %152 = vmatprep.mubr.f32.mxu0 0.0
  %153 = vmatmul.mubr.f32.gmra.mxu0 %v62
  %v154 = vpop.f32.mrf.mxu0
  %v155 = vadd.f32 0.0, %v154
  %v156 = vpop.f32.mrf.mxu0
  %v157 = vadd.f32 0.0, %v156
  %158 = vmatprep.mubr.f32.mxu0 0.0
  %159 = vmatmul.mubr.f32.gmra.mxu0 %v65
  %v160 = vpop.f32.mrf.mxu0
  %v161 = vadd.f32 0.0, %v160
  %v162 = vpop.f32.mrf.mxu0
  %v163 = vadd.f32 0.0, %v162
  %164 = vmatprep.mubr.f32.mxu0 0.0
  %165 = vmatmul.mubr.f32.gmra.mxu0 %v68
  %v166 = vpop.f32.mrf.mxu0
  %v167 = vadd.f32 0.0, %v166
  %v168 = vpop.f32.mrf.mxu0
  %v169 = vadd.f32 0.0, %v168
  %170 = vdwg.mxu0
  %v171 = vld [vmem:[%s4] sm:$0xff]
  %v172 = vld [vmem:[%s4 + $0x8] sm:$0xff]
  %v173 = vld [vmem:[%s4 + $0x10] sm:$0xff]
  %v174 = vld [vmem:[%s4 + $0x18] sm:$0xff]
  %v175 = vld [vmem:[%s4 + $0x20] sm:$0xff]
  %v176 = vld [vmem:[%s4 + $0x28] sm:$0xff]
  %v177 = vld [vmem:[%s4 + $0x30] sm:$0xff]
  %v178 = vld [vmem:[%s4 + $0x38] sm:$0xff]
  %v179 = vld [vmem:[%s4 + $0x40] sm:$0xff]
  %v180 = vld [vmem:[%s4 + $0x48] sm:$0xff]
  %v181 = vld [vmem:[%s4 + $0x50] sm:$0xff]
  %v182 = vld [vmem:[%s4 + $0x58] sm:$0xff]
  %v183 = vmul.f32 %v137, %v171
  %v184 = vmul.f32 %v139, %v172
  %v185 = vmul.f32 %v143, %v173
  %v186 = vmul.f32 %v145, %v174
  %v187 = vmul.f32 %v149, %v175
  %v188 = vmul.f32 %v151, %v176
  %v189 = vmul.f32 %v155, %v177
  %v190 = vmul.f32 %v157, %v178
  %v191 = vmul.f32 %v161, %v179
  %v192 = vmul.f32 %v163, %v180
  %v193 = vmul.f32 %v167, %v181
  %v194 = vmul.f32 %v169, %v182
  %201 = vrot.lane.b32.xlu0 %v183, 64
  %v202 = vpop.permute.xlu0 %201
  %203 = vrot.lane.b32.xlu0 %v185, 64
  %v204 = vpop.permute.xlu0 %203
  %205 = vrot.lane.b32.xlu0 %v187, 64
  %v206 = vpop.permute.xlu0 %205
  %207 = vrot.lane.b32.xlu0 %v189, 64
  %v208 = vpop.permute.xlu0 %207
  %209 = vrot.lane.b32.xlu0 %v191, 64
  %v210 = vpop.permute.xlu0 %209
  %211 = vrot.lane.b32.xlu0 %v193, 64
  %v212 = vpop.permute.xlu0 %211
  %v219 = vadd.f32 %v183, %v202
  %v220 = vadd.f32 %v185, %v204
  %v221 = vadd.f32 %v187, %v206
  %v222 = vadd.f32 %v189, %v208
  %v223 = vadd.f32 %v191, %v210
  %v224 = vadd.f32 %v193, %v212
  %v225 = vadd.f32 %v219, %v184
  %v226 = vadd.f32 %v220, %v186
  %v227 = vadd.f32 %v221, %v188
  %v228 = vadd.f32 %v222, %v190
  %v229 = vadd.f32 %v223, %v192
  %v230 = vadd.f32 %v224, %v194
  %237 = vrot.lane.b32.xlu0 %v184, 64
  %v238 = vpop.permute.xlu0 %237
  %239 = vrot.lane.b32.xlu0 %v186, 64
  %v240 = vpop.permute.xlu0 %239
  %241 = vrot.lane.b32.xlu0 %v188, 64
  %v242 = vpop.permute.xlu0 %241
  %243 = vrot.lane.b32.xlu0 %v190, 64
  %v244 = vpop.permute.xlu0 %243
  %245 = vrot.lane.b32.xlu0 %v192, 64
  %v246 = vpop.permute.xlu0 %245
  %247 = vrot.lane.b32.xlu0 %v194, 64
  %v248 = vpop.permute.xlu0 %247
  %v255 = vadd.f32 %v225, %v238
  %v256 = vadd.f32 %v226, %v240
  %v257 = vadd.f32 %v227, %v242
  %v258 = vadd.f32 %v228, %v244
  %v259 = vadd.f32 %v229, %v246
  %v260 = vadd.f32 %v230, %v248
  %v261 = vadd.f32 %v255, %v257
  %v262 = vadd.f32 %v256, %v258
  %v263 = vadd.f32 %v261, %v259
  %v264 = vadd.f32 %v262, %v260
  %v265 = vld [vmem:[%s5] sm:$0xff]
  %v266 = vld [vmem:[%s5 + $0x8] sm:$0xff]
  %v267 = vadd.f32 %v263, %v265
  %v268 = vadd.f32 %v264, %v266
  %v269 = vld [vmem:[%s1] sm:$0xff]
  %v270 = vld [vmem:[%s1 + $0x8] sm:$0xff]
  %v271 = vld [vmem:[%s6] sm:$0xff]
  %v272 = vld [vmem:[%s7] sm:$0x1]
  %v274 = vlaneseq
  %v275 = vshrl.u32 %v274, 7
  %v276 = vsub.s32 0, %v275
  %v277 = vrot.slane %v272, %v276
  %vm279 = vcmask 64512
  %v281 = vsel %vm279, %v269, 0
  %v284 = vsel %vm279, %v270, 0
  %286 = vmatprep.subr.mxu0 0.0
  %287 = vmatpush1.msra.mxu0 0.0
  %288 = vmatprep.subr.mxu0 0.0
  %289 = vmatpush1.msra.mxu0 0.0
  %290 = vmatprep.subr.mxu0 0.0
  %291 = vmatpush1.msra.mxu0 0.0
  %292 = vmatprep.subr.mxu0 0.0
  %293 = vmatpush1.msra.mxu0 0.0
  %294 = vmatprep.subr.mxu0 0.0
  %295 = vmatpush1.msra.mxu0 0.0
  %296 = vmatprep.subr.mxu0 0.0
  %297 = vmatpush1.msra.mxu0 0.0
  %298 = vmatprep.subr.mxu0 0.0
  %299 = vmatpush1.msra.mxu0 0.0
  %300 = vmatprep.subr.mxu0 0.0
  %301 = vmatpush1.msra.mxu0 0.0
  %302 = vmatprep.subr.mxu0 0.0
  %303 = vmatpush1.msra.mxu0 0.0
  %304 = vmatprep.subr.mxu0 0.0
  %305 = vmatpush1.msra.mxu0 0.0
  %306 = vmatprep.subr.mxu0 0.0
  %307 = vmatpush1.msra.mxu0 0.0
  %308 = vmatprep.subr.mxu0 0.0
  %309 = vmatpush1.msra.mxu0 0.0
  %310 = vmatprep.subr.mxu0 0.0
  %311 = vmatpush1.msra.mxu0 0.0
  %312 = vmatprep.subr.mxu0 0.0
  %313 = vmatpush1.msra.mxu0 0.0
  %314 = vmatprep.subr.mxu0 0.0
  %315 = vmatpush1.msra.mxu0 0.0
  %316 = vmatprep.subr.mxu0 0.0
  %317 = vmatpush1.msra.mxu0 %v271
  %318 = vmatprep.subr.mxu0 0.0
  %319 = vmatpush2.msra.mxu0 0.0
  %320 = vmatprep.subr.mxu0 0.0
  %321 = vmatpush2.msra.mxu0 0.0
  %322 = vmatprep.subr.mxu0 0.0
  %323 = vmatpush2.msra.mxu0 0.0
  %324 = vmatprep.subr.mxu0 0.0
  %325 = vmatpush2.msra.mxu0 0.0
  %326 = vmatprep.subr.mxu0 0.0
  %327 = vmatpush2.msra.mxu0 0.0
  %328 = vmatprep.subr.mxu0 0.0
  %329 = vmatpush2.msra.mxu0 0.0
  %330 = vmatprep.subr.mxu0 0.0
  %331 = vmatpush2.msra.mxu0 0.0
  %332 = vmatprep.subr.mxu0 0.0
  %333 = vmatpush2.msra.mxu0 0.0
  %334 = vmatprep.subr.mxu0 0.0
  %335 = vmatpush2.msra.mxu0 0.0
  %336 = vmatprep.subr.mxu0 0.0
  %337 = vmatpush2.msra.mxu0 0.0
  %338 = vmatprep.subr.mxu0 0.0
  %339 = vmatpush2.msra.mxu0 0.0
  %340 = vmatprep.subr.mxu0 0.0
  %341 = vmatpush2.msra.mxu0 0.0
  %342 = vmatprep.subr.mxu0 0.0
  %343 = vmatpush2.msra.mxu0 0.0
  %344 = vmatprep.subr.mxu0 0.0
  %345 = vmatpush2.msra.mxu0 0.0
  %346 = vmatprep.subr.mxu0 0.0
  %347 = vmatpush2.msra.mxu0 0.0
  %348 = vmatprep.subr.mxu0 0.0
  %349 = vmatpush2.msra.mxu0 0.0
  %350 = vmatprep.mubr.f32.mxu0 0.0
  %351 = vmatmul.mubr.f32.gmra.mxu0 %v281
  %v352 = vpop.f32.mrf.mxu0
  %v353 = vadd.f32 %v277, %v352
  %v354 = vpop.f32.mrf.mxu0
  %355 = vmatprep.mubr.f32.mxu0 0.0
  %356 = vmatmul.mubr.f32.gmra.mxu0 %v284
  %v357 = vpop.f32.mrf.mxu0
  %v358 = vadd.f32 %v277, %v357
  %v359 = vpop.f32.mrf.mxu0
  %360 = vdwg.mxu0
  %v361 = vld [vmem:[%s3] sm:$0xff]
  %v362 = vld [vmem:[%s3 + $0x8] sm:$0xff]
  %v363 = vld [vmem:[%s3 + $0x10] sm:$0xff]
  %v364 = vld [vmem:[%s3 + $0x18] sm:$0xff]
  %v365 = vld [vmem:[%s3 + $0x20] sm:$0xff]
  %v366 = vld [vmem:[%s3 + $0x28] sm:$0xff]
  %v368 = vsel %vm51, %v361, 0
  %v371 = vsel %vm51, %v362, 0
  %v374 = vsel %vm51, %v363, 0
  %v377 = vsel %vm51, %v364, 0
  %v380 = vsel %vm51, %v365, 0
  %v383 = vsel %vm51, %v366, 0
  %385 = vmatprep.subr.mxu0 0.0
  %386 = vmatpush1.msra.mxu0 0.0
  %387 = vmatprep.subr.mxu0 0.0
  %388 = vmatpush1.msra.mxu0 0.0
  %389 = vmatprep.subr.mxu0 0.0
  %390 = vmatpush1.msra.mxu0 0.0
  %391 = vmatprep.subr.mxu0 0.0
  %392 = vmatpush1.msra.mxu0 0.0
  %393 = vmatprep.subr.mxu0 0.0
  %394 = vmatpush1.msra.mxu0 0.0
  %395 = vmatprep.subr.mxu0 0.0
  %396 = vmatpush1.msra.mxu0 0.0
  %397 = vmatprep.subr.mxu0 0.0
  %398 = vmatpush1.msra.mxu0 0.0
  %399 = vmatprep.subr.mxu0 0.0
  %400 = vmatpush1.msra.mxu0 0.0
  %401 = vmatprep.subr.mxu0 0.0
  %402 = vmatpush1.msra.mxu0 0.0
  %403 = vmatprep.subr.mxu0 0.0
  %404 = vmatpush1.msra.mxu0 0.0
  %405 = vmatprep.subr.mxu0 0.0
  %406 = vmatpush1.msra.mxu0 0.0
  %407 = vmatprep.subr.mxu0 0.0
  %408 = vmatpush1.msra.mxu0 0.0
  %409 = vmatprep.subr.mxu0 0.0
  %410 = vmatpush1.msra.mxu0 0.0
  %411 = vmatprep.subr.mxu0 0.0
  %412 = vmatpush1.msra.mxu0 0.0
  %413 = vmatprep.subr.mxu0 0.0
  %414 = vmatpush1.msra.mxu0 %v358
  %415 = vmatprep.subr.mxu0 0.0
  %416 = vmatpush1.msra.mxu0 %v353
  %417 = vmatprep.subr.mxu0 0.0
  %418 = vmatpush2.msra.mxu0 0.0
  %419 = vmatprep.subr.mxu0 0.0
  %420 = vmatpush2.msra.mxu0 0.0
  %421 = vmatprep.subr.mxu0 0.0
  %422 = vmatpush2.msra.mxu0 0.0
  %423 = vmatprep.subr.mxu0 0.0
  %424 = vmatpush2.msra.mxu0 0.0
  %425 = vmatprep.subr.mxu0 0.0
  %426 = vmatpush2.msra.mxu0 0.0
  %427 = vmatprep.subr.mxu0 0.0
  %428 = vmatpush2.msra.mxu0 0.0
  %429 = vmatprep.subr.mxu0 0.0
  %430 = vmatpush2.msra.mxu0 0.0
  %431 = vmatprep.subr.mxu0 0.0
  %432 = vmatpush2.msra.mxu0 0.0
  %433 = vmatprep.subr.mxu0 0.0
  %434 = vmatpush2.msra.mxu0 0.0
  %435 = vmatprep.subr.mxu0 0.0
  %436 = vmatpush2.msra.mxu0 0.0
  %437 = vmatprep.subr.mxu0 0.0
  %438 = vmatpush2.msra.mxu0 0.0
  %439 = vmatprep.subr.mxu0 0.0
  %440 = vmatpush2.msra.mxu0 0.0
  %441 = vmatprep.subr.mxu0 0.0
  %442 = vmatpush2.msra.mxu0 0.0
  %443 = vmatprep.subr.mxu0 0.0
  %444 = vmatpush2.msra.mxu0 0.0
  %445 = vmatprep.subr.mxu0 0.0
  %446 = vmatpush2.msra.mxu0 0.0
  %447 = vmatprep.subr.mxu0 0.0
  %448 = vmatpush2.msra.mxu0 0.0
  %449 = vmatprep.mubr.f32.mxu0 0.0
  %450 = vmatmul.mubr.f32.gmra.mxu0 %v368
  %v451 = vpop.f32.mrf.mxu0
  %v452 = vadd.f32 0.0, %v451
  %v453 = vpop.f32.mrf.mxu0
  %454 = vmatprep.mubr.f32.mxu0 0.0
  %455 = vmatmul.mubr.f32.gmra.mxu0 %v371
  %v456 = vpop.f32.mrf.mxu0
  %v457 = vadd.f32 0.0, %v456
  %v458 = vpop.f32.mrf.mxu0
  %459 = vmatprep.mubr.f32.mxu0 0.0
  %460 = vmatmul.mubr.f32.gmra.mxu0 %v374
  %v461 = vpop.f32.mrf.mxu0
  %v462 = vadd.f32 0.0, %v461
  %v463 = vpop.f32.mrf.mxu0
  %464 = vmatprep.mubr.f32.mxu0 0.0
  %465 = vmatmul.mubr.f32.gmra.mxu0 %v377
  %v466 = vpop.f32.mrf.mxu0
  %v467 = vadd.f32 0.0, %v466
  %v468 = vpop.f32.mrf.mxu0
  %469 = vmatprep.mubr.f32.mxu0 0.0
  %470 = vmatmul.mubr.f32.gmra.mxu0 %v380
  %v471 = vpop.f32.mrf.mxu0
  %v472 = vadd.f32 0.0, %v471
  %v473 = vpop.f32.mrf.mxu0
  %474 = vmatprep.mubr.f32.mxu0 0.0
  %475 = vmatmul.mubr.f32.gmra.mxu0 %v383
  %v476 = vpop.f32.mrf.mxu0
  %v477 = vadd.f32 0.0, %v476
  %v478 = vpop.f32.mrf.mxu0
  %479 = vdwg.mxu0
  %v480 = vld [vmem:[%s8] sm:$0xff]
  %v481 = vld [vmem:[%s8 + $0x8] sm:$0xff]
  %v482 = vld [vmem:[%s8 + $0x10] sm:$0xff]
  %v483 = vld [vmem:[%s8 + $0x18] sm:$0xff]
  %v484 = vld [vmem:[%s8 + $0x20] sm:$0xff]
  %v485 = vld [vmem:[%s8 + $0x28] sm:$0xff]
  %v486 = vld [vmem:[%s8 + $0x30] sm:$0xff]
  %v487 = vld [vmem:[%s8 + $0x38] sm:$0xff]
  %s488 = scalar_lea.vmem %s8, 64
  %v489 = vld [vmem:[%s488] sm:$0xff]
  %v490 = vld [vmem:[%s488 + $0x8] sm:$0xff]
  %v491 = vld [vmem:[%s488 + $0x10] sm:$0xff]
  %v492 = vld [vmem:[%s488 + $0x18] sm:$0xff]
  %v493 = vld [vmem:[%s488 + $0x20] sm:$0xff]
  %v494 = vld [vmem:[%s488 + $0x28] sm:$0xff]
  %v495 = vld [vmem:[%s488 + $0x30] sm:$0xff]
  %v496 = vld [vmem:[%s488 + $0x38] sm:$0xff]
  %vm497 = vcmask 523264
  %v499 = vsel %vm497, %v462, 0
  %v502 = vsel %vm497, %v467, 0
  %504 = vmatprep.subr.mxu0 0.0
  %505 = vmatpush1.msra.mxu0 0.0
  %506 = vmatprep.subr.mxu0 0.0
  %507 = vmatpush1.msra.mxu0 0.0
  %508 = vmatprep.subr.mxu0 0.0
  %509 = vmatpush1.msra.mxu0 0.0
  %510 = vmatprep.subr.mxu0 0.0
  %511 = vmatpush1.msra.mxu0 0.0
  %512 = vmatprep.subr.mxu0 0.0
  %513 = vmatpush1.msra.mxu0 0.0
  %514 = vmatprep.subr.mxu0 0.0
  %515 = vmatpush1.msra.mxu0 0.0
  %516 = vmatprep.subr.mxu0 0.0
  %517 = vmatpush1.msra.mxu0 0.0
  %518 = vmatprep.subr.mxu0 0.0
  %519 = vmatpush1.msra.mxu0 0.0
  %520 = vmatprep.subr.mxu0 0.0
  %521 = vmatpush1.msra.mxu0 %v496
  %522 = vmatprep.subr.mxu0 0.0
  %523 = vmatpush1.msra.mxu0 %v495
  %524 = vmatprep.subr.mxu0 0.0
  %525 = vmatpush1.msra.mxu0 %v494
  %526 = vmatprep.subr.mxu0 0.0
  %527 = vmatpush1.msra.mxu0 %v493
  %528 = vmatprep.subr.mxu0 0.0
  %529 = vmatpush1.msra.mxu0 %v492
  %530 = vmatprep.subr.mxu0 0.0
  %531 = vmatpush1.msra.mxu0 %v491
  %532 = vmatprep.subr.mxu0 0.0
  %533 = vmatpush1.msra.mxu0 %v490
  %534 = vmatprep.subr.mxu0 0.0
  %535 = vmatpush1.msra.mxu0 %v489
  %536 = vmatprep.subr.mxu0 0.0
  %537 = vmatpush2.msra.mxu0 0.0
  %538 = vmatprep.subr.mxu0 0.0
  %539 = vmatpush2.msra.mxu0 0.0
  %540 = vmatprep.subr.mxu0 0.0
  %541 = vmatpush2.msra.mxu0 0.0
  %542 = vmatprep.subr.mxu0 0.0
  %543 = vmatpush2.msra.mxu0 0.0
  %544 = vmatprep.subr.mxu0 0.0
  %545 = vmatpush2.msra.mxu0 0.0
  %546 = vmatprep.subr.mxu0 0.0
  %547 = vmatpush2.msra.mxu0 0.0
  %548 = vmatprep.subr.mxu0 0.0
  %549 = vmatpush2.msra.mxu0 0.0
  %550 = vmatprep.subr.mxu0 0.0
  %551 = vmatpush2.msra.mxu0 0.0
  %552 = vmatprep.subr.mxu0 0.0
  %553 = vmatpush2.msra.mxu0 0.0
  %554 = vmatprep.subr.mxu0 0.0
  %555 = vmatpush2.msra.mxu0 0.0
  %556 = vmatprep.subr.mxu0 0.0
  %557 = vmatpush2.msra.mxu0 0.0
  %558 = vmatprep.subr.mxu0 0.0
  %559 = vmatpush2.msra.mxu0 0.0
  %560 = vmatprep.subr.mxu0 0.0
  %561 = vmatpush2.msra.mxu0 0.0
  %562 = vmatprep.subr.mxu0 0.0
  %563 = vmatpush2.msra.mxu0 0.0
  %564 = vmatprep.subr.mxu0 0.0
  %565 = vmatpush2.msra.mxu0 0.0
  %566 = vmatprep.subr.mxu0 0.0
  %567 = vmatpush2.msra.mxu0 0.0
  %568 = vmatprep.mubr.f32.mxu0 0.0
  %569 = vmatmul.mubr.f32.gmra.mxu0 %v499
  %v570 = vpop.f32.mrf.mxu0
  %v571 = vadd.f32 0.0, %v570
  %v572 = vpop.f32.mrf.mxu0
  %573 = vmatprep.mubr.f32.mxu0 0.0
  %574 = vmatmul.mubr.f32.gmra.mxu0 %v502
  %v575 = vpop.f32.mrf.mxu0
  %v576 = vadd.f32 0.0, %v575
  %v577 = vpop.f32.mrf.mxu0
  %578 = vdwg.mxu0
  %v580 = vsel %vm497, %v452, 0
  %v583 = vsel %vm497, %v457, 0
  %585 = vmatprep.subr.mxu0 0.0
  %586 = vmatpush1.msra.mxu0 0.0
  %587 = vmatprep.subr.mxu0 0.0
  %588 = vmatpush1.msra.mxu0 0.0
  %589 = vmatprep.subr.mxu0 0.0
  %590 = vmatpush1.msra.mxu0 0.0
  %591 = vmatprep.subr.mxu0 0.0
  %592 = vmatpush1.msra.mxu0 0.0
  %593 = vmatprep.subr.mxu0 0.0
  %594 = vmatpush1.msra.mxu0 0.0
  %595 = vmatprep.subr.mxu0 0.0
  %596 = vmatpush1.msra.mxu0 0.0
  %597 = vmatprep.subr.mxu0 0.0
  %598 = vmatpush1.msra.mxu0 0.0
  %599 = vmatprep.subr.mxu0 0.0
  %600 = vmatpush1.msra.mxu0 0.0
  %601 = vmatprep.subr.mxu0 0.0
  %602 = vmatpush1.msra.mxu0 %v487
  %603 = vmatprep.subr.mxu0 0.0
  %604 = vmatpush1.msra.mxu0 %v486
  %605 = vmatprep.subr.mxu0 0.0
  %606 = vmatpush1.msra.mxu0 %v485
  %607 = vmatprep.subr.mxu0 0.0
  %608 = vmatpush1.msra.mxu0 %v484
  %609 = vmatprep.subr.mxu0 0.0
  %610 = vmatpush1.msra.mxu0 %v483
  %611 = vmatprep.subr.mxu0 0.0
  %612 = vmatpush1.msra.mxu0 %v482
  %613 = vmatprep.subr.mxu0 0.0
  %614 = vmatpush1.msra.mxu0 %v481
  %615 = vmatprep.subr.mxu0 0.0
  %616 = vmatpush1.msra.mxu0 %v480
  %617 = vmatprep.subr.mxu0 0.0
  %618 = vmatpush2.msra.mxu0 0.0
  %619 = vmatprep.subr.mxu0 0.0
  %620 = vmatpush2.msra.mxu0 0.0
  %621 = vmatprep.subr.mxu0 0.0
  %622 = vmatpush2.msra.mxu0 0.0
  %623 = vmatprep.subr.mxu0 0.0
  %624 = vmatpush2.msra.mxu0 0.0
  %625 = vmatprep.subr.mxu0 0.0
  %626 = vmatpush2.msra.mxu0 0.0
  %627 = vmatprep.subr.mxu0 0.0
  %628 = vmatpush2.msra.mxu0 0.0
  %629 = vmatprep.subr.mxu0 0.0
  %630 = vmatpush2.msra.mxu0 0.0
  %631 = vmatprep.subr.mxu0 0.0
  %632 = vmatpush2.msra.mxu0 0.0
  %633 = vmatprep.subr.mxu0 0.0
  %634 = vmatpush2.msra.mxu0 0.0
  %635 = vmatprep.subr.mxu0 0.0
  %636 = vmatpush2.msra.mxu0 0.0
  %637 = vmatprep.subr.mxu0 0.0
  %638 = vmatpush2.msra.mxu0 0.0
  %639 = vmatprep.subr.mxu0 0.0
  %640 = vmatpush2.msra.mxu0 0.0
  %641 = vmatprep.subr.mxu0 0.0
  %642 = vmatpush2.msra.mxu0 0.0
  %643 = vmatprep.subr.mxu0 0.0
  %644 = vmatpush2.msra.mxu0 0.0
  %645 = vmatprep.subr.mxu0 0.0
  %646 = vmatpush2.msra.mxu0 0.0
  %647 = vmatprep.subr.mxu0 0.0
  %648 = vmatpush2.msra.mxu0 0.0
  %649 = vmatprep.mubr.f32.mxu0 0.0
  %650 = vmatmul.mubr.f32.gmra.mxu0 %v580
  %v651 = vpop.f32.mrf.mxu0
  %v652 = vadd.f32 %v571, %v651
  %v653 = vpop.f32.mrf.mxu0
  %654 = vmatprep.mubr.f32.mxu0 0.0
  %655 = vmatmul.mubr.f32.gmra.mxu0 %v583
  %v656 = vpop.f32.mrf.mxu0
  %v657 = vadd.f32 %v576, %v656
  %v658 = vpop.f32.mrf.mxu0
  %659 = vdwg.mxu0
  %s660 = scalar_lea.vmem %s8, 128
  %v661 = vld [vmem:[%s660] sm:$0xff]
  %v662 = vld [vmem:[%s660 + $0x8] sm:$0xff]
  %v663 = vld [vmem:[%s660 + $0x10] sm:$0xff]
  %v664 = vld [vmem:[%s660 + $0x18] sm:$0xff]
  %v665 = vld [vmem:[%s660 + $0x20] sm:$0xff]
  %v666 = vld [vmem:[%s660 + $0x28] sm:$0xff]
  %v667 = vld [vmem:[%s660 + $0x30] sm:$0xff]
  %v668 = vld [vmem:[%s660 + $0x38] sm:$0xff]
  %v670 = vsel %vm497, %v472, 0
  %v673 = vsel %vm497, %v477, 0
  %675 = vmatprep.subr.mxu0 0.0
  %676 = vmatpush1.msra.mxu0 0.0
  %677 = vmatprep.subr.mxu0 0.0
  %678 = vmatpush1.msra.mxu0 0.0
  %679 = vmatprep.subr.mxu0 0.0
  %680 = vmatpush1.msra.mxu0 0.0
  %681 = vmatprep.subr.mxu0 0.0
  %682 = vmatpush1.msra.mxu0 0.0
  %683 = vmatprep.subr.mxu0 0.0
  %684 = vmatpush1.msra.mxu0 0.0
  %685 = vmatprep.subr.mxu0 0.0
  %686 = vmatpush1.msra.mxu0 0.0
  %687 = vmatprep.subr.mxu0 0.0
  %688 = vmatpush1.msra.mxu0 0.0
  %689 = vmatprep.subr.mxu0 0.0
  %690 = vmatpush1.msra.mxu0 0.0
  %691 = vmatprep.subr.mxu0 0.0
  %692 = vmatpush1.msra.mxu0 %v668
  %693 = vmatprep.subr.mxu0 0.0
  %694 = vmatpush1.msra.mxu0 %v667
  %695 = vmatprep.subr.mxu0 0.0
  %696 = vmatpush1.msra.mxu0 %v666
  %697 = vmatprep.subr.mxu0 0.0
  %698 = vmatpush1.msra.mxu0 %v665
  %699 = vmatprep.subr.mxu0 0.0
  %700 = vmatpush1.msra.mxu0 %v664
  %701 = vmatprep.subr.mxu0 0.0
  %702 = vmatpush1.msra.mxu0 %v663
  %703 = vmatprep.subr.mxu0 0.0
  %704 = vmatpush1.msra.mxu0 %v662
  %705 = vmatprep.subr.mxu0 0.0
  %706 = vmatpush1.msra.mxu0 %v661
  %707 = vmatprep.subr.mxu0 0.0
  %708 = vmatpush2.msra.mxu0 0.0
  %709 = vmatprep.subr.mxu0 0.0
  %710 = vmatpush2.msra.mxu0 0.0
  %711 = vmatprep.subr.mxu0 0.0
  %712 = vmatpush2.msra.mxu0 0.0
  %713 = vmatprep.subr.mxu0 0.0
  %714 = vmatpush2.msra.mxu0 0.0
  %715 = vmatprep.subr.mxu0 0.0
  %716 = vmatpush2.msra.mxu0 0.0
  %717 = vmatprep.subr.mxu0 0.0
  %718 = vmatpush2.msra.mxu0 0.0
  %719 = vmatprep.subr.mxu0 0.0
  %720 = vmatpush2.msra.mxu0 0.0
  %721 = vmatprep.subr.mxu0 0.0
  %722 = vmatpush2.msra.mxu0 0.0
  %723 = vmatprep.subr.mxu0 0.0
  %724 = vmatpush2.msra.mxu0 0.0
  %725 = vmatprep.subr.mxu0 0.0
  %726 = vmatpush2.msra.mxu0 0.0
  %727 = vmatprep.subr.mxu0 0.0
  %728 = vmatpush2.msra.mxu0 0.0
  %729 = vmatprep.subr.mxu0 0.0
  %730 = vmatpush2.msra.mxu0 0.0
  %731 = vmatprep.subr.mxu0 0.0
  %732 = vmatpush2.msra.mxu0 0.0
  %733 = vmatprep.subr.mxu0 0.0
  %734 = vmatpush2.msra.mxu0 0.0
  %735 = vmatprep.subr.mxu0 0.0
  %736 = vmatpush2.msra.mxu0 0.0
  %737 = vmatprep.subr.mxu0 0.0
  %738 = vmatpush2.msra.mxu0 0.0
  %739 = vmatprep.mubr.f32.mxu0 0.0
  %740 = vmatmul.mubr.f32.gmra.mxu0 %v670
  %v741 = vpop.f32.mrf.mxu0
  %v742 = vadd.f32 0.0, %v741
  %v743 = vpop.f32.mrf.mxu0
  %744 = vmatprep.mubr.f32.mxu0 0.0
  %745 = vmatmul.mubr.f32.gmra.mxu0 %v673
  %v746 = vpop.f32.mrf.mxu0
  %v747 = vadd.f32 0.0, %v746
  %v748 = vpop.f32.mrf.mxu0
  %749 = vdwg.mxu0
  %v750 = vadd.f32 %v652, %v742
  %v751 = vadd.f32 %v657, %v747
  %v752 = vld [vmem:[%s9] sm:$0x1]
  %v754 = vlaneseq
  %v755 = vshrl.u32 %v754, 7
  %v756 = vsub.s32 0, %v755
  %v757 = vrot.slane %v752, %v756
  %v759 = vadd.f32 %v750, %v757
  %v760 = vadd.f32 %v751, %v757
  %vm761 = vcmp.gt.f32.partialorder %v267, 0.0
  %vm762 = vcmp.gt.f32.partialorder %v268, 0.0
  %v763 = vmul.f32 %v267, 0.01
  %v764 = vmul.f32 %v268, 0.01
  %v765 = vsel %vm761, %v267, %v763
  %v766 = vsel %vm762, %v268, %v764
  %vm767 = vcmp.gt.f32.partialorder %v759, 0.0
  %vm768 = vcmp.gt.f32.partialorder %v760, 0.0
  %v769 = vmul.f32 %v759, 0.01
  %v770 = vmul.f32 %v760, 0.01
  %v771 = vsel %vm767, %v759, %v769
  %v772 = vsel %vm768, %v760, %v770
  %v773 = vsel %vm497, %v765, 0.0
  %v774 = vsel %vm497, %v766, 0.0
  %v775 = vadd.f32 %v773, %v774
  %v776 = vrot.slane %v775, 4
  %v777 = vadd.f32 %v775, %v776
  %v778 = vrot.slane %v777, 2
  %v779 = vadd.f32 %v777, %v778
  %v780 = vrot.slane %v779, 1
  %v781 = vadd.f32 %v779, %v780
  %v782 = vrcp.pop 16.0
  %v783 = vmul.f32 %v781, %v782
  %v784 = vsel %vm497, %v771, 0.0
  %v785 = vsel %vm497, %v772, 0.0
  %v786 = vadd.f32 %v784, %v785
  %v787 = vrot.slane %v786, 4
  %v788 = vadd.f32 %v786, %v787
  %v789 = vrot.slane %v788, 2
  %v790 = vadd.f32 %v788, %v789
  %v791 = vrot.slane %v790, 1
  %v792 = vadd.f32 %v790, %v791
  %v793 = vmul.f32 %v792, %v782
  %795 = vrot.lane.b32.xlu0 %v793, 64
  %v796 = vpop.permute.xlu0 %795
  %v798 = vsel %vm497, %v783, %v796
  %v799 = vld [vmem:[%s10] sm:$0xff]
  %v800 = vld [vmem:[%s10 + $0x8] sm:$0xff]
  %v801 = vld [vmem:[%s10 + $0x10] sm:$0xff]
  %v802 = vld [vmem:[%s10 + $0x18] sm:$0xff]
  %v803 = vld [vmem:[%s10 + $0x20] sm:$0xff]
  %v804 = vld [vmem:[%s10 + $0x28] sm:$0xff]
  %v805 = vld [vmem:[%s10 + $0x30] sm:$0xff]
  %v806 = vld [vmem:[%s10 + $0x38] sm:$0xff]
  %v807 = vld [vmem:[%s10 + $0x40] sm:$0xff]
  %v808 = vld [vmem:[%s10 + $0x48] sm:$0xff]
  %v809 = vld [vmem:[%s10 + $0x50] sm:$0xff]
  %v810 = vld [vmem:[%s10 + $0x58] sm:$0xff]
  %v811 = vld [vmem:[%s10 + $0x60] sm:$0xff]
  %v812 = vld [vmem:[%s10 + $0x68] sm:$0xff]
  %v813 = vld [vmem:[%s10 + $0x70] sm:$0xff]
  %v814 = vld [vmem:[%s10 + $0x78] sm:$0xff]
  %815 = vmatprep.subr.mxu0 0.0
  %816 = vmatpush1.msra.mxu0 %v814
  %817 = vmatprep.subr.mxu0 0.0
  %818 = vmatpush1.msra.mxu0 %v813
  %819 = vmatprep.subr.mxu0 0.0
  %820 = vmatpush1.msra.mxu0 %v812
  %821 = vmatprep.subr.mxu0 0.0
  %822 = vmatpush1.msra.mxu0 %v811
  %823 = vmatprep.subr.mxu0 0.0
  %824 = vmatpush1.msra.mxu0 %v810
  %825 = vmatprep.subr.mxu0 0.0
  %826 = vmatpush1.msra.mxu0 %v809
  %827 = vmatprep.subr.mxu0 0.0
  %828 = vmatpush1.msra.mxu0 %v808
  %829 = vmatprep.subr.mxu0 0.0
  %830 = vmatpush1.msra.mxu0 %v807
  %831 = vmatprep.subr.mxu0 0.0
  %832 = vmatpush1.msra.mxu0 %v806
  %833 = vmatprep.subr.mxu0 0.0
  %834 = vmatpush1.msra.mxu0 %v805
  %835 = vmatprep.subr.mxu0 0.0
  %836 = vmatpush1.msra.mxu0 %v804
  %837 = vmatprep.subr.mxu0 0.0
  %838 = vmatpush1.msra.mxu0 %v803
  %839 = vmatprep.subr.mxu0 0.0
  %840 = vmatpush1.msra.mxu0 %v802
  %841 = vmatprep.subr.mxu0 0.0
  %842 = vmatpush1.msra.mxu0 %v801
  %843 = vmatprep.subr.mxu0 0.0
  %844 = vmatpush1.msra.mxu0 %v800
  %845 = vmatprep.subr.mxu0 0.0
  %846 = vmatpush1.msra.mxu0 %v799
  %847 = vmatprep.subr.mxu0 0.0
  %848 = vmatpush2.msra.mxu0 0.0
  %849 = vmatprep.subr.mxu0 0.0
  %850 = vmatpush2.msra.mxu0 0.0
  %851 = vmatprep.subr.mxu0 0.0
  %852 = vmatpush2.msra.mxu0 0.0
  %853 = vmatprep.subr.mxu0 0.0
  %854 = vmatpush2.msra.mxu0 0.0
  %855 = vmatprep.subr.mxu0 0.0
  %856 = vmatpush2.msra.mxu0 0.0
  %857 = vmatprep.subr.mxu0 0.0
  %858 = vmatpush2.msra.mxu0 0.0
  %859 = vmatprep.subr.mxu0 0.0
  %860 = vmatpush2.msra.mxu0 0.0
  %861 = vmatprep.subr.mxu0 0.0
  %862 = vmatpush2.msra.mxu0 0.0
  %863 = vmatprep.subr.mxu0 0.0
  %864 = vmatpush2.msra.mxu0 0.0
  %865 = vmatprep.subr.mxu0 0.0
  %866 = vmatpush2.msra.mxu0 0.0
  %867 = vmatprep.subr.mxu0 0.0
  %868 = vmatpush2.msra.mxu0 0.0
  %869 = vmatprep.subr.mxu0 0.0
  %870 = vmatpush2.msra.mxu0 0.0
  %871 = vmatprep.subr.mxu0 0.0
  %872 = vmatpush2.msra.mxu0 0.0
  %873 = vmatprep.subr.mxu0 0.0
  %874 = vmatpush2.msra.mxu0 0.0
  %875 = vmatprep.subr.mxu0 0.0
  %876 = vmatpush2.msra.mxu0 0.0
  %877 = vmatprep.subr.mxu0 0.0
  %878 = vmatpush2.msra.mxu0 0.0
  %879 = vmatprep.mubr.f32.mxu0 0.0
  %880 = vmatmul.mubr.f32.gmra.mxu0 %v798
  %v881 = vpop.f32.mrf.mxu0
  %v882 = vadd.f32 0.0, %v881
  %v883 = vpop.f32.mrf.mxu0
  %884 = vdwg.mxu0
  %v885 = vmax.f32 %v882, 0.0
  %v886 = vld [vmem:[%s11] sm:$0xff]
  %v887 = vld [vmem:[%s11 + $0x8] sm:$0xff]
  %v888 = vld [vmem:[%s11 + $0x10] sm:$0xff]
  %v889 = vld [vmem:[%s11 + $0x18] sm:$0xff]
  %vm890 = vcmask 261120
  %v892 = vsel %vm890, %v885, 0
  %894 = vmatprep.subr.mxu0 0.0
  %895 = vmatpush1.msra.mxu0 0.0
  %896 = vmatprep.subr.mxu0 0.0
  %897 = vmatpush1.msra.mxu0 0.0
  %898 = vmatprep.subr.mxu0 0.0
  %899 = vmatpush1.msra.mxu0 0.0
  %900 = vmatprep.subr.mxu0 0.0
  %901 = vmatpush1.msra.mxu0 0.0
  %902 = vmatprep.subr.mxu0 0.0
  %903 = vmatpush1.msra.mxu0 0.0
  %904 = vmatprep.subr.mxu0 0.0
  %905 = vmatpush1.msra.mxu0 0.0
  %906 = vmatprep.subr.mxu0 0.0
  %907 = vmatpush1.msra.mxu0 0.0
  %908 = vmatprep.subr.mxu0 0.0
  %909 = vmatpush1.msra.mxu0 0.0
  %910 = vmatprep.subr.mxu0 0.0
  %911 = vmatpush1.msra.mxu0 0.0
  %912 = vmatprep.subr.mxu0 0.0
  %913 = vmatpush1.msra.mxu0 0.0
  %914 = vmatprep.subr.mxu0 0.0
  %915 = vmatpush1.msra.mxu0 0.0
  %916 = vmatprep.subr.mxu0 0.0
  %917 = vmatpush1.msra.mxu0 0.0
  %918 = vmatprep.subr.mxu0 0.0
  %919 = vmatpush1.msra.mxu0 %v889
  %920 = vmatprep.subr.mxu0 0.0
  %921 = vmatpush1.msra.mxu0 %v888
  %922 = vmatprep.subr.mxu0 0.0
  %923 = vmatpush1.msra.mxu0 %v887
  %924 = vmatprep.subr.mxu0 0.0
  %925 = vmatpush1.msra.mxu0 %v886
  %926 = vmatprep.subr.mxu0 0.0
  %927 = vmatpush2.msra.mxu0 0.0
  %928 = vmatprep.subr.mxu0 0.0
  %929 = vmatpush2.msra.mxu0 0.0
  %930 = vmatprep.subr.mxu0 0.0
  %931 = vmatpush2.msra.mxu0 0.0
  %932 = vmatprep.subr.mxu0 0.0
  %933 = vmatpush2.msra.mxu0 0.0
  %934 = vmatprep.subr.mxu0 0.0
  %935 = vmatpush2.msra.mxu0 0.0
  %936 = vmatprep.subr.mxu0 0.0
  %937 = vmatpush2.msra.mxu0 0.0
  %938 = vmatprep.subr.mxu0 0.0
  %939 = vmatpush2.msra.mxu0 0.0
  %940 = vmatprep.subr.mxu0 0.0
  %941 = vmatpush2.msra.mxu0 0.0
  %942 = vmatprep.subr.mxu0 0.0
  %943 = vmatpush2.msra.mxu0 0.0
  %944 = vmatprep.subr.mxu0 0.0
  %945 = vmatpush2.msra.mxu0 0.0
  %946 = vmatprep.subr.mxu0 0.0
  %947 = vmatpush2.msra.mxu0 0.0
  %948 = vmatprep.subr.mxu0 0.0
  %949 = vmatpush2.msra.mxu0 0.0
  %950 = vmatprep.subr.mxu0 0.0
  %951 = vmatpush2.msra.mxu0 0.0
  %952 = vmatprep.subr.mxu0 0.0
  %953 = vmatpush2.msra.mxu0 0.0
  %954 = vmatprep.subr.mxu0 0.0
  %955 = vmatpush2.msra.mxu0 0.0
  %956 = vmatprep.subr.mxu0 0.0
  %957 = vmatpush2.msra.mxu0 0.0
  %958 = vmatprep.mubr.f32.mxu0 0.0
  %959 = vmatmul.mubr.f32.gmra.mxu0 %v892
  %v960 = vpop.f32.mrf.mxu0
  %v961 = vadd.f32 0.0, %v960
  %v962 = vpop.f32.mrf.mxu0
  %963 = vdwg.mxu0
  %v964 = vxor.u32 %v961, 2147483648
  %v965 = vmul.f32 %v964, 1.442695
  %v966 = vpow.pop %v965
  %v967 = vadd.f32 %v966, 1.0
  %v968 = vrcp.pop %v967
  %v969 = vmul.f32 1.0, %v968
  %v970 = vlaneseq
  %v971 = vshrl.u32 %v970, 7
  %v972 = vsub.s32 0, %v971
  %v973 = vrot.slane %v969, %v972
  %v974 = vmul.f32 %v765, %v973
  %v975 = vmul.f32 %v766, %v973
  %977 = vrot.lane.b32.xlu0 %v973, 64
  %v978 = vpop.permute.xlu0 %977
  %v980 = vmul.f32 %v771, %v978
  %v981 = vmul.f32 %v772, %v978
  %v982 = vadd.f32 %v974, %v980
  %v983 = vadd.f32 %v975, %v981
  %984 = vst.msk [vmem:[%s12] sm:$0xff] %vm497, %v982
  %985 = vst.msk [vmem:[%s12 + $0x8] sm:$0xff] %vm497, %v983
  // Predicated region
  $region50: #{avwgcn_forward.1} parent=0 // pred_check
    _
  $region51: #{avwgcn_forward.1} parent=0 // pred_check_branch
    %987 = sbr.rel (0) target = $region53
  $region52: #{avwgcn_forward.1} parent=0 // pred_region
    _
  $region53: #{avwgcn_forward.1} parent=0 // pred_fallthru
    _
  // Predicated region
  $region54: #{avwgcn_forward.1} parent=0 // pred_check
    _
  $region55: #{avwgcn_forward.1} parent=0 // pred_check_branch
    %989 = sbr.rel (0) target = $region57
  $region56: #{avwgcn_forward.1} parent=0 // pred_region
    _
  $region57: #{avwgcn_forward.1} parent=0 // pred_fallthru
    _

</llo_original>
